<compile_context>
chip_gen: v7x
topology: tpu7x:2x2x1
jax: 0.10.0
libtpu: 0.0.40
codegen_flags: <defaults>
</compile_context>

<pallas_src>
import functools

import jax
import jax.numpy as jnp
from jax.experimental import pallas as pl
from jax.experimental.pallas import tpu as pltpu

BN_EPS = 1e-5


def _round_up(x, m):
    return (x + m - 1) // m * m


@functools.lru_cache(maxsize=None)
def _tn_max():
    # v6e / v7x MXU is 2x256^2 -> prefer 256-wide N tiles; older parts keep 128.
    try:
        kind = jax.devices()[0].device_kind.lower()
    except Exception:
        return 256
    if any(t in kind for t in ("v2", "v3", "v4", "v5")):
        return 128
    return 256


# ---------------------------------------------------------------------------
# Pallas kernels
# ---------------------------------------------------------------------------

def _gemm_bn_act_kernel(a_ref, b_ref, s_ref, t_ref, *rest, relu, has_residual):
    """Grouped GEMM with K-reduction over the grid's last axis.

    a_ref: (1, TM, Ck) bf16, b_ref: (1, Ck, TN) bf16, s/t_ref: (1, TN) f32,
    optional r_ref: (TM, TN) f32, o_ref: (TM, TN) f32, acc_ref scratch f32.
    out = act( (sum_k a_k @ b_k) * scale + shift [+ residual] )
    """
    if has_residual:
        r_ref, o_ref, acc_ref = rest
    else:
        o_ref, acc_ref = rest

    k = pl.program_id(2)

    @pl.when(k == 0)
    def _():
        acc_ref[...] = jnp.zeros_like(acc_ref)

    acc_ref[...] += jnp.dot(a_ref[0], b_ref[0],
                            preferred_element_type=jnp.float32)

    @pl.when(k == pl.num_programs(2) - 1)
    def _():
        out = acc_ref[...] * s_ref[...] + t_ref[...]
        if has_residual:
            out = out + r_ref[...]
        if relu:
            out = jnp.maximum(out, 0.0)
        o_ref[...] = out.astype(o_ref.dtype)


def grouped_matmul_bn_act(a, b, scale, shift, residual=None, relu=True):
    """Fused grouped GEMM + per-output-channel affine + residual + ReLU.

    a: (G, M, Ck), b: (G, Ck, Cout), scale/shift: (Cout,), residual: (M, Cout).
    Returns (M, Cout) float32.
    """
    G, M, Ck = a.shape
    Cout = b.shape[2]

    TM = min(128, _round_up(M, 16))          # bf16 sublane packing: mult of 16
    Mp = _round_up(M, TM)
    Cout_p = _round_up(Cout, 128)            # lane-dense stores
    TN = min(_tn_max(), Cout_p)
    if Cout_p % TN:
        TN = 128

    a_p = a.astype(jnp.bfloat16)
    if Mp != M:
        a_p = jnp.pad(a_p, ((0, 0), (0, Mp - M), (0, 0)))
    b_p = b.astype(jnp.bfloat16)
    if Cout_p != Cout:
        b_p = jnp.pad(b_p, ((0, 0), (0, 0), (0, Cout_p - Cout)))
    s2 = jnp.pad(scale.astype(jnp.float32), (0, Cout_p - Cout)).reshape(1, Cout_p)
    t2 = jnp.pad(shift.astype(jnp.float32), (0, Cout_p - Cout)).reshape(1, Cout_p)

    has_res = residual is not None
    inputs = [a_p, b_p, s2, t2]
    in_specs = [
        pl.BlockSpec((1, TM, Ck), lambda i, j, k: (k, i, 0)),
        pl.BlockSpec((1, Ck, TN), lambda i, j, k: (k, 0, j)),
        pl.BlockSpec((1, TN), lambda i, j, k: (0, j)),
        pl.BlockSpec((1, TN), lambda i, j, k: (0, j)),
    ]
    if has_res:
        r_p = jnp.pad(residual.astype(jnp.float32),
                      ((0, Mp - M), (0, Cout_p - Cout)))
        inputs.append(r_p)
        in_specs.append(pl.BlockSpec((TM, TN), lambda i, j, k: (i, j)))

    out = pl.pallas_call(
        functools.partial(_gemm_bn_act_kernel, relu=relu, has_residual=has_res),
        out_shape=jax.ShapeDtypeStruct((Mp, Cout_p), jnp.float32),
        grid_spec=pltpu.PrefetchScalarGridSpec(
            num_scalar_prefetch=0,
            grid=(Mp // TM, Cout_p // TN, G),
            in_specs=in_specs,
            out_specs=pl.BlockSpec((TM, TN), lambda i, j, k: (i, j)),
            scratch_shapes=[pltpu.VMEM((TM, TN), jnp.float32)],
        ),
        compiler_params=pltpu.CompilerParams(
            dimension_semantics=("parallel", "parallel", "arbitrary")),
    )(*inputs)
    return out[:M, :Cout]


def _maxpool_kernel(x_ref, o_ref, acc_ref):
    t = pl.program_id(1)

    @pl.when(t == 0)
    def _():
        acc_ref[...] = jnp.full(acc_ref.shape, -jnp.inf, acc_ref.dtype)

    acc_ref[...] = jnp.maximum(acc_ref[...], x_ref[0])

    @pl.when(t == pl.num_programs(1) - 1)
    def _():
        o_ref[...] = acc_ref[...]


def _maxpool_taps(flat_taps):
    """flat_taps: (Kt, Rp, 128) f32 -> elementwise max over tap axis, (Rp, 128)."""
    Kt, Rp, L = flat_taps.shape
    TR = min(128, _round_up(Rp, 8))
    assert Rp % TR == 0
    return pl.pallas_call(
        _maxpool_kernel,
        out_shape=jax.ShapeDtypeStruct((Rp, L), jnp.float32),
        grid_spec=pltpu.PrefetchScalarGridSpec(
            num_scalar_prefetch=0,
            grid=(Rp // TR, Kt),
            in_specs=[pl.BlockSpec((1, TR, L), lambda i, t: (t, i, 0))],
            out_specs=pl.BlockSpec((TR, L), lambda i, t: (i, 0)),
            scratch_shapes=[pltpu.VMEM((TR, L), jnp.float32)],
        ),
        compiler_params=pltpu.CompilerParams(
            dimension_semantics=("parallel", "arbitrary")),
    )(flat_taps)


# ---------------------------------------------------------------------------
# Conv3d / MaxPool3d wrappers (tap extraction in plain JAX, GEMM in Pallas)
# ---------------------------------------------------------------------------

def _extract_taps(x, k, stride, padding, pad_value=0.0):
    """x: (N, D, H, W, C) -> list of k^3 taps, each (N, Do, Ho, Wo, C)."""
    N, D, H, W, C = x.shape
    Do = (D + 2 * padding - k) // stride + 1
    Ho = (H + 2 * padding - k) // stride + 1
    Wo = (W + 2 * padding - k) // stride + 1
    xp = jnp.pad(x, ((0, 0), (padding, padding), (padding, padding),
                     (padding, padding), (0, 0)), constant_values=pad_value)
    taps = []
    for a in range(k):
        for b in range(k):
            for c in range(k):
                taps.append(xp[:, a:a + Do * stride:stride,
                               b:b + Ho * stride:stride,
                               c:c + Wo * stride:stride, :])
    return taps, (N, Do, Ho, Wo)


def conv3d_bn_act(x, w, scale, shift, stride, padding, relu=True, residual=None):
    """Conv3d (no bias) + eval-BatchNorm3d + optional residual + optional ReLU.

    x: (N, D, H, W, Cin),  w: (k, k, k, Cin, Cout)."""
    k = w.shape[0]
    Cin, Cout = w.shape[3], w.shape[4]
    Kt = k * k * k
    x_bf = x.astype(jnp.bfloat16)
    taps, (N, Do, Ho, Wo) = _extract_taps(x_bf, k, stride, padding)
    M = N * Do * Ho * Wo

    if Cin % 64 == 0:
        # grouped layout: tap axis becomes the K-reduction grid axis.
        a = jnp.stack([t.reshape(M, Cin) for t in taps], axis=0)   # (Kt, M, Cin)
        b = w.reshape(Kt, Cin, Cout)
    else:
        # tiny Cin (stem Cin=1): flat im2col, pad K to a lane multiple.
        K = Kt * Cin
        Kp = _round_up(K, 128)
        cols = jnp.stack(taps, axis=-2).reshape(M, K)
        a = jnp.pad(cols, ((0, 0), (0, Kp - K)))[None]             # (1, M, Kp)
        b = jnp.pad(w.reshape(K, Cout), ((0, Kp - K), (0, 0)))[None]

    res2 = None if residual is None else residual.reshape(M, Cout)
    y = grouped_matmul_bn_act(a, b, scale, shift, residual=res2, relu=relu)
    return y.reshape(N, Do, Ho, Wo, Cout)


def maxpool3d(x, k=3, stride=2, padding=1):
    C = x.shape[-1]
    taps, (N, Do, Ho, Wo) = _extract_taps(x, k, stride, padding,
                                          pad_value=-jnp.inf)
    M = N * Do * Ho * Wo
    total = M * C
    L = 128
    R = _round_up(total, L) // L
    TR = min(128, _round_up(R, 8))
    Rp = _round_up(R, TR)
    # lane-dense flattening: the pooling max is elementwise over taps, so any
    # consistent flattening of the (M, C) payload works; use (rows, 128).
    flat = jnp.stack([t.astype(jnp.float32).reshape(-1) for t in taps], axis=0)
    flat = jnp.pad(flat, ((0, 0), (0, Rp * L - total)),
                   constant_values=-jnp.inf).reshape(len(taps), Rp, L)
    y = _maxpool_taps(flat)
    return y.reshape(-1)[:total].reshape(N, Do, Ho, Wo, C)


# ---------------------------------------------------------------------------
# Parameter initialization (deterministic, mirrors the PyTorch __init__)
# ---------------------------------------------------------------------------

def kaiming_conv(key, k, cin, cout):
    fan_out = cout * k * k * k                      # mode='fan_out', relu gain
    std = (2.0 / fan_out) ** 0.5
    return jax.random.normal(key, (k, k, k, cin, cout), jnp.float32) * std


def bn_params(c, gamma=1.0):
    # eval-mode BN with running_mean=0, running_var=1 (fresh buffers):
    #   y = x * gamma / sqrt(1 + eps) + beta,  beta = 0
    scale = jnp.full((c,), gamma / (1.0 + BN_EPS) ** 0.5, jnp.float32)
    shift = jnp.zeros((c,), jnp.float32)
    return scale, shift


def init_basic_block(key, inplanes, planes, stride):
    k1, k2, k3 = jax.random.split(key, 3)
    p = {
        "conv1_w": kaiming_conv(k1, 3, inplanes, planes),
        "bn1": bn_params(planes),
        "conv2_w": kaiming_conv(k2, 3, planes, planes),
        # this module unconditionally zero-inits every BasicBlock's bn2.weight
        "bn2": bn_params(planes, gamma=0.0),
        "stride": stride,
    }
    if stride != 1 or inplanes != planes:
        p["ds_w"] = kaiming_conv(k3, 1, inplanes, planes)
        p["ds_bn"] = bn_params(planes)
    return p


def init_resnet(key, layers=(1, 1, 1, 1), num_classes=10):
    keys = jax.random.split(key, 4)
    params = {"conv1_w": kaiming_conv(keys[0], 7, 1, 64),
              "bn1": bn_params(64)}
    inplanes = 64
    plan = [(64, layers[0], 1), (128, layers[1], 2),
            (256, layers[2], 2), (512, layers[3], 2)]
    all_layers = []
    bkey = keys[1]
    for planes, n_blocks, stride in plan:
        layer, s = [], stride
        for _ in range(n_blocks):
            bkey, sub = jax.random.split(bkey)
            layer.append(init_basic_block(sub, inplanes, planes, s))
            inplanes, s = planes, 1
        all_layers.append(layer)
    params["layers"] = all_layers
    # nn.Linear default init: U(-1/sqrt(fan_in), 1/sqrt(fan_in))
    bound = 1.0 / (512 ** 0.5)
    params["fc_w"] = jax.random.uniform(keys[2], (512, num_classes),
                                        jnp.float32, -bound, bound)
    params["fc_b"] = jax.random.uniform(keys[3], (num_classes,),
                                        jnp.float32, -bound, bound)
    return params


# ---------------------------------------------------------------------------
# Forward pass
# ---------------------------------------------------------------------------

def basic_block_forward(x, p):
    identity = x
    out = conv3d_bn_act(x, p["conv1_w"], *p["bn1"],
                        stride=p["stride"], padding=1, relu=True)
    if "ds_w" in p:
        identity = conv3d_bn_act(x, p["ds_w"], *p["ds_bn"],
                                 stride=p["stride"], padding=0, relu=False)
    # conv2 -> bn2 -> (+identity) -> relu, fused in one Pallas call
    out = conv3d_bn_act(out, p["conv2_w"], *p["bn2"],
                        stride=1, padding=1, relu=True, residual=identity)
    return out


def resnet_forward(params, x_ncdhw):
    # x: (N, 1, D, H, W)  (PyTorch NCDHW)  ->  channels-last
    x = jnp.transpose(x_ncdhw, (0, 2, 3, 4, 1)).astype(jnp.float32)
    x = conv3d_bn_act(x, params["conv1_w"], *params["bn1"],
                      stride=2, padding=3, relu=True)
    x = maxpool3d(x, k=3, stride=2, padding=1)
    for layer in params["layers"]:
        for blk in layer:
            x = basic_block_forward(x, blk)
    # AdaptiveAvgPool3d((1,1,1)) == global spatial mean (tiny; JAX glue)
    x = jnp.mean(x, axis=(1, 2, 3))                 # (N, 512)
    # fc head through the same Pallas GEMM kernel (scale=1, shift=bias,
    # no residual, Cout padded to 128 for lane-dense stores)
    num_classes = params["fc_b"].shape[0]
    ones = jnp.ones((num_classes,), jnp.float32)
    y = grouped_matmul_bn_act(x[None], params["fc_w"][None],
                              ones, params["fc_b"], relu=False)
    return y


if __name__ == "__main__":
    key = jax.random.PRNGKey(0)
    pkey, xkey = jax.random.split(key)
    # ResNet(BasicBlock, layers=[1,1,1,1], num_classes=10) at small 3D shapes
    params = init_resnet(pkey, layers=(1, 1, 1, 1), num_classes=10)
    x = jax.random.normal(xkey, (2, 1, 16, 16, 16), jnp.float32)
    y = resnet_forward(params, x)
    y = jax.block_until_ready(y)
    assert y.shape == (2, 10), y.shape
    assert bool(jnp.all(jnp.isfinite(y)))
    print("KERNEL_OK")
</pallas_src>

<mosaic_0001>
module attributes {stable_mosaic.version = 11 : i64} {
  func.func @_gemm_bn_act_kernel(%arg0: i32, %arg1: i32, %arg2: i32, %arg3: memref<1x128x384xbf16, #tpu.memory_space<vmem>>, %arg4: memref<1x384x128xbf16, #tpu.memory_space<vmem>>, %arg5: memref<1x128xf32, #tpu.memory_space<vmem>>, %arg6: memref<1x128xf32, #tpu.memory_space<vmem>>, %arg7: memref<128x128xf32, #tpu.memory_space<vmem>>, %arg8: memref<128x128xf32, #tpu.memory_space<vmem>>) attributes {dimension_semantics = [#tpu.dimension_semantics<parallel>, #tpu.dimension_semantics<parallel>, #tpu.dimension_semantics<arbitrary>], iteration_bounds = array<i64: 8, 1, 1>, scalar_prefetch = 0 : i64, scratch_operands = 1 : i64, tpu.core_type = #tpu.core_type<tc>, window_params = [{transform_indices = @transform_0, window_bounds = array<i64: 1, 128, 384>}, {transform_indices = @transform_1, window_bounds = array<i64: 1, 384, 128>}, {transform_indices = @transform_2, window_bounds = array<i64: 1, 128>}, {transform_indices = @transform_3, window_bounds = array<i64: 1, 128>}, {transform_indices = @transform_4, window_bounds = array<i64: 128, 128>}]} {
    %c0_i32 = arith.constant 0 : i32
    %0 = arith.cmpi eq, %arg2, %c0_i32 : i32
    %1 = arith.extui %0 : i1 to i32
    %c0_i32_0 = arith.constant 0 : i32
    %2 = arith.cmpi ne, %1, %c0_i32_0 : i32
    scf.if %2 {
      %cst_12 = arith.constant 0.000000e+00 : f32
      %14 = vector.broadcast %cst_12 : f32 to vector<128x128xf32>
      %c0_13 = arith.constant 0 : index
      %c0_14 = arith.constant 0 : index
      %15 = vector.load %arg8[%c0_13, %c0_14] : memref<128x128xf32, #tpu.memory_space<vmem>>, vector<128x128xf32>
      tpu.vector_store %arg8[%c0_13, %c0_14], %14 {strides = array<i32>} : memref<128x128xf32, #tpu.memory_space<vmem>>, vector<128x128xf32>,
    } else {
    }
    %c0 = arith.constant 0 : index
    %c0_1 = arith.constant 0 : index
    %3 = vector.load %arg8[%c0, %c0_1] : memref<128x128xf32, #tpu.memory_space<vmem>>, vector<128x128xf32>
    %c0_2 = arith.constant 0 : index
    %c0_3 = arith.constant 0 : index
    %c0_4 = arith.constant 0 : index
    %4 = vector.load %arg3[%c0_2, %c0_3, %c0_4] : memref<1x128x384xbf16, #tpu.memory_space<vmem>>, vector<1x128x384xbf16>
    %5 = vector.shape_cast %4 : vector<1x128x384xbf16> to vector<128x384xbf16>
    %c0_5 = arith.constant 0 : index
    %c0_6 = arith.constant 0 : index
    %c0_7 = arith.constant 0 : index
    %6 = vector.load %arg4[%c0_5, %c0_6, %c0_7] : memref<1x384x128xbf16, #tpu.memory_space<vmem>>, vector<1x384x128xbf16>
    %7 = vector.shape_cast %6 : vector<1x384x128xbf16> to vector<384x128xbf16>
    %cst = arith.constant dense<0.000000e+00> : vector<128x128xf32>
    %8 = tpu.matmul %5, %7, %cst {dimension_numbers = #tpu.dot_dimension_numbers<[1], [0], [0], [1], [0, 0, 1, 1], [], []>} : vector<128x384xbf16>, vector<384x128xbf16>, vector<128x128xf32> -> vector<128x128xf32>
    %9 = arith.addf %3, %8 : vector<128x128xf32>
    %c0_8 = arith.constant 0 : index
    %c0_9 = arith.constant 0 : index
    %10 = vector.load %arg8[%c0_8, %c0_9] : memref<128x128xf32, #tpu.memory_space<vmem>>, vector<128x128xf32>
    tpu.vector_store %arg8[%c0_8, %c0_9], %9 {strides = array<i32>} : memref<128x128xf32, #tpu.memory_space<vmem>>, vector<128x128xf32>,
    %c0_i32_10 = arith.constant 0 : i32
    %11 = arith.cmpi eq, %arg2, %c0_i32_10 : i32
    %12 = arith.extui %11 : i1 to i32
    %c0_i32_11 = arith.constant 0 : i32
    %13 = arith.cmpi ne, %12, %c0_i32_11 : i32
    scf.if %13 {
      %c0_12 = arith.constant 0 : index
      %c0_13 = arith.constant 0 : index
      %14 = vector.load %arg8[%c0_12, %c0_13] : memref<128x128xf32, #tpu.memory_space<vmem>>, vector<128x128xf32>
      %c0_14 = arith.constant 0 : index
      %c0_15 = arith.constant 0 : index
      %15 = vector.load %arg5[%c0_14, %c0_15] : memref<1x128xf32, #tpu.memory_space<vmem>>, vector<1x128xf32>
      %16 = vector.broadcast %15 : vector<1x128xf32> to vector<128x128xf32>
      %17 = arith.mulf %14, %16 : vector<128x128xf32>
      %c0_16 = arith.constant 0 : index
      %c0_17 = arith.constant 0 : index
      %18 = vector.load %arg6[%c0_16, %c0_17] : memref<1x128xf32, #tpu.memory_space<vmem>>, vector<1x128xf32>
      %19 = vector.broadcast %18 : vector<1x128xf32> to vector<128x128xf32>
      %20 = arith.addf %17, %19 : vector<128x128xf32>
      %cst_18 = arith.constant 0.000000e+00 : f32
      %21 = vector.broadcast %cst_18 : f32 to vector<128x128xf32>
      %22 = arith.maximumf %20, %21 : vector<128x128xf32>
      %c0_19 = arith.constant 0 : index
      %c0_20 = arith.constant 0 : index
      %23 = vector.load %arg7[%c0_19, %c0_20] : memref<128x128xf32, #tpu.memory_space<vmem>>, vector<128x128xf32>
      tpu.vector_store %arg7[%c0_19, %c0_20], %22 {strides = array<i32>} : memref<128x128xf32, #tpu.memory_space<vmem>>, vector<128x128xf32>,
    } else {
    }
    return
  }
  func.func @transform_0(%arg0: i32, %arg1: i32, %arg2: i32) -> (i32, i32, i32) {
    %c0_i32 = arith.constant 0 : i32
    %c0_i32_0 = arith.constant 0 : i32
    return %arg2, %arg0, %c0_i32 : i32, i32, i32
  }
  func.func @transform_1(%arg0: i32, %arg1: i32, %arg2: i32) -> (i32, i32, i32) {
    %c0_i32 = arith.constant 0 : i32
    %c0_i32_0 = arith.constant 0 : i32
    return %arg2, %c0_i32, %arg1 : i32, i32, i32
  }
  func.func @transform_2(%arg0: i32, %arg1: i32, %arg2: i32) -> (i32, i32) {
    %c0_i32 = arith.constant 0 : i32
    %c0_i32_0 = arith.constant 0 : i32
    return %c0_i32, %arg1 : i32, i32
  }
  func.func @transform_3(%arg0: i32, %arg1: i32, %arg2: i32) -> (i32, i32) {
    %c0_i32 = arith.constant 0 : i32
    %c0_i32_0 = arith.constant 0 : i32
    return %c0_i32, %arg1 : i32, i32
  }
  func.func @transform_4(%arg0: i32, %arg1: i32, %arg2: i32) -> (i32, i32) {
    %c0_i32 = arith.constant 0 : i32
    return %arg0, %arg1 : i32, i32
  }
}

</mosaic_0001>

<llo_original>
// kernel: tpu_custom_call.1
$region0: #{tpu_custom_call.1}
  #allocation0 [shape = 'u32[]', space=smem, size = 0x4, offset = 0x4, fixed_abs, tag = 'smem constant byte address 0x4 - core index']
  #allocation1 [shape = 'u32[144,128]{1,0:T(1,128)}', space=vmem, size = 0x12000, scoped, tag = 'internal scratch']
  #allocation2 [shape = 'f32[128,128]{1,0:T(8,128)}', space=vmem, size = 0x10000, scoped, tag = 'scratch operand']
  %s0 = inlined_call_operand.hbm [shape: bf16[1,1024,384], index: 0, kind: input, shape index: {}]
  %s1 = inlined_call_operand.hbm [shape: bf16[1,384,128], index: 1, kind: input, shape index: {}]
  %s2 = inlined_call_operand.vmem [shape: f32[1,128], index: 2, kind: input, shape index: {}]
  %s3 = inlined_call_operand.vmem [shape: f32[1,128], index: 3, kind: input, shape index: {}]
  %s4 = inlined_call_operand.hbm [shape: f32[1024,128], index: 4, kind: output, shape index: {}]
  %s5 = sld [smem:[#allocation0]]
  $region65: #{tpu_custom_call.1} parent=0
    _
  %s7 = ssub.s32 1, %s5
  %s8 = scalar_select 0, %s7, %s5
  $region1: #{tpu_custom_call.1} parent=0
    #allocation3 [shape = 'u8[196608]{0}', space=vmem, size = 0x30000, scoped, tag = 'input window, operand 0']
    #allocation4 [shape = 's32[2]{0}', space=sflag, size = 0x8, scoped, tag = 'scoped memory for tpu_custom_call.1']
    #allocation5 [shape = 's32[2]{0}', space=sflag, size = 0x8, scoped, tag = 'scoped memory for tpu_custom_call.1']
    #allocation6 [shape = 'u8[98304]{0}', space=vmem, size = 0x18000, scoped, tag = 'input window, operand 1, single buffered']
    #allocation7 [shape = 's32[1]{0}', space=sflag, size = 0x4, scoped, tag = 'scoped memory for tpu_custom_call.1']
    #allocation8 [shape = 'u8[131072]{0}', space=vmem, size = 0x20000, scoped, tag = 'output window, operand 0']
    %9 = vsyncpa [#allocation4], 0
    %s10 = scalar_lea.sflag [#allocation4], 1
    %11 = vsyncpa %s10, 0
    %12 = vsyncpa [#allocation7], 0
    %13 = vsyncpa [#allocation5], 0
    %s14 = scalar_lea.sflag [#allocation5], 1
    %15 = vsyncpa %s14, 0
    loop: start=0, step=1, limit=10
    $region2: #{tpu_custom_call.1} parent=1 // loop_pre_header
      _
    $region3: #{tpu_custom_call.1} parent=1 // loop_header
      %s17 = sphi 0, %s21
      %p18 = scmp.ge.s32.totalorder %s17, 10
      %s24 = sphi 0, %s43
      %s25 = sphi 0, %s39
      %s26 = sphi 0, %s35
      %s27 = sphi 0, %s24
      %s28 = sphi 0, %s25
      %s29 = sphi 0, %s26
      %s30 = sphi 0, %s27
      %s31 = sphi 0, %s28
      %s32 = sphi 0, %s29
      %s48 = sphi 0, %s50
      %s51 = sphi 0, %s48
      %s52 = sphi 0, %s51
      %s68 = sphi 0, %s52
      %s76 = sphi 0, %s78
      %s79 = sphi 0, %s76
      %s80 = sphi 0, %s79
      %s96 = sphi 0, %s80
      %s102 = sphi 0, %s104
      %s105 = sphi 0, %s102
      %s106 = sphi 0, %s105
      %s122 = sphi 0, %s106
      %s128 = sphi 0, %s130
      %s131 = sphi 0, %s128
      %s132 = sphi 0, %s131
      %s148 = sphi 0, %s132
      %s156 = sphi 0, %s158
      %s159 = sphi 0, %s156
      %s160 = sphi 0, %s159
      %s176 = sphi 0, %s160
    $region4: #{tpu_custom_call.1} parent=1 // loop_header_branch
      %20 = sbr.rel (%p18) target = $region8
    $region5: #{tpu_custom_call.1} parent=1 // loop_body
      %s22 = ssub.s32 %s17, 1
      %s23 = ssub.s32 %s17, 2
      %s33 = sadd.s32 1, %s26
      %p34 = scmp.ge.s32.totalorder %s33, 1
      %s35 = scalar_select %p34, 0, %s33
      %s36 = sadd.s32 1, %s25
      %s37 = scalar_select %p34, %s36, %s25
      %p38 = scmp.ge.s32.totalorder %s37, 1
      %s39 = scalar_select %p38, 0, %s37
      %s40 = sadd.s32 1, %s24
      %s41 = scalar_select %p38, %s40, %s24
      %p42 = scmp.ge.s32.totalorder %s41, 8
      %s43 = scalar_select %p42, 0, %s41
      %s44 = ssub.s32 %s26, %s35
      %s45 = ssub.s32 %s24, %s43
      %s46 = sor.u32 %s44, %s45
      %p47 = scmp.eq.s32.totalorder %s46, 0
      %s49 = sadd.s32 %s48, 1
      %s50 = scalar_select %p47, %s48, %s49
      %p53 = pneg %p47
      %p54 = scmp.eq.s32.totalorder %s17, 7
      %p55 = por %p53, %p54
      %p56 = scmp.ne.s32.totalorder %s48, %s51
      %p57 = scmp.eq.s32.totalorder %s17, 0
      %p58 = por %p56, %p57
      %p59 = scmp.ne.s32.totalorder %s48, %s51
      %p60 = scmp.eq.s32.totalorder %s22, 7
      %p61 = por %p59, %p60
      %p62 = scmp.ne.s32.totalorder %s51, %s52
      %p63 = scmp.eq.s32.totalorder %s22, 0
      %p64 = por %p62, %p63
      %p65 = scmp.ne.s32.totalorder %s51, %s52
      %p66 = scmp.eq.s32.totalorder %s23, 7
      %p67 = por %p65, %p66
      %p69 = scmp.ne.s32.totalorder %s52, %s68
      %p70 = scmp.eq.s32.totalorder %s23, 0
      %p71 = por %p69, %p70
      %s72 = ssub.s32 %s26, %s35
      %s73 = ssub.s32 %s25, %s39
      %s74 = sor.u32 %s72, %s73
      %p75 = scmp.eq.s32.totalorder %s74, 0
      %s77 = sadd.s32 %s76, 1
      %s78 = scalar_select %p75, %s76, %s77
      %p81 = pneg %p75
      %p82 = scmp.eq.s32.totalorder %s17, 7
      %p83 = por %p81, %p82
      %p84 = scmp.ne.s32.totalorder %s76, %s79
      %p85 = scmp.eq.s32.totalorder %s17, 0
      %p86 = por %p84, %p85
      %p87 = scmp.ne.s32.totalorder %s76, %s79
      %p88 = scmp.eq.s32.totalorder %s22, 7
      %p89 = por %p87, %p88
      %p90 = scmp.ne.s32.totalorder %s79, %s80
      %p91 = scmp.eq.s32.totalorder %s22, 0
      %p92 = por %p90, %p91
      %p93 = scmp.ne.s32.totalorder %s79, %s80
      %p94 = scmp.eq.s32.totalorder %s23, 7
      %p95 = por %p93, %p94
      %p97 = scmp.ne.s32.totalorder %s80, %s96
      %p98 = scmp.eq.s32.totalorder %s23, 0
      %p99 = por %p97, %p98
      %s100 = ssub.s32 %s25, %s39
      %p101 = scmp.eq.s32.totalorder %s100, 0
      %s103 = sadd.s32 %s102, 1
      %s104 = scalar_select %p101, %s102, %s103
      %p107 = pneg %p101
      %p108 = scmp.eq.s32.totalorder %s17, 7
      %p109 = por %p107, %p108
      %p110 = scmp.ne.s32.totalorder %s102, %s105
      %p111 = scmp.eq.s32.totalorder %s17, 0
      %p112 = por %p110, %p111
      %p113 = scmp.ne.s32.totalorder %s102, %s105
      %p114 = scmp.eq.s32.totalorder %s22, 7
      %p115 = por %p113, %p114
      %p116 = scmp.ne.s32.totalorder %s105, %s106
      %p117 = scmp.eq.s32.totalorder %s22, 0
      %p118 = por %p116, %p117
      %p119 = scmp.ne.s32.totalorder %s105, %s106
      %p120 = scmp.eq.s32.totalorder %s23, 7
      %p121 = por %p119, %p120
      %p123 = scmp.ne.s32.totalorder %s106, %s122
      %p124 = scmp.eq.s32.totalorder %s23, 0
      %p125 = por %p123, %p124
      %s126 = ssub.s32 %s25, %s39
      %p127 = scmp.eq.s32.totalorder %s126, 0
      %s129 = sadd.s32 %s128, 1
      %s130 = scalar_select %p127, %s128, %s129
      %p133 = pneg %p127
      %p134 = scmp.eq.s32.totalorder %s17, 7
      %p135 = por %p133, %p134
      %p136 = scmp.ne.s32.totalorder %s128, %s131
      %p137 = scmp.eq.s32.totalorder %s17, 0
      %p138 = por %p136, %p137
      %p139 = scmp.ne.s32.totalorder %s128, %s131
      %p140 = scmp.eq.s32.totalorder %s22, 7
      %p141 = por %p139, %p140
      %p142 = scmp.ne.s32.totalorder %s131, %s132
      %p143 = scmp.eq.s32.totalorder %s22, 0
      %p144 = por %p142, %p143
      %p145 = scmp.ne.s32.totalorder %s131, %s132
      %p146 = scmp.eq.s32.totalorder %s23, 7
      %p147 = por %p145, %p146
      %p149 = scmp.ne.s32.totalorder %s132, %s148
      %p150 = scmp.eq.s32.totalorder %s23, 0
      %p151 = por %p149, %p150
      %s152 = ssub.s32 %s24, %s43
      %s153 = ssub.s32 %s25, %s39
      %s154 = sor.u32 %s152, %s153
      %p155 = scmp.eq.s32.totalorder %s154, 0
      %s157 = sadd.s32 %s156, 1
      %s158 = scalar_select %p155, %s156, %s157
      %p161 = pneg %p155
      %p162 = scmp.eq.s32.totalorder %s17, 7
      %p163 = por %p161, %p162
      %p164 = scmp.ne.s32.totalorder %s156, %s159
      %p165 = scmp.eq.s32.totalorder %s17, 0
      %p166 = por %p164, %p165
      %p167 = scmp.ne.s32.totalorder %s156, %s159
      %p168 = scmp.eq.s32.totalorder %s22, 7
      %p169 = por %p167, %p168
      %p170 = scmp.ne.s32.totalorder %s159, %s160
      %p171 = scmp.eq.s32.totalorder %s22, 0
      %p172 = por %p170, %p171
      %p173 = scmp.ne.s32.totalorder %s159, %s160
      %p174 = scmp.eq.s32.totalorder %s23, 7
      %p175 = por %p173, %p174
      %p177 = scmp.ne.s32.totalorder %s160, %s176
      %p178 = scmp.eq.s32.totalorder %s23, 0
      %p179 = por %p177, %p178
      %p180 = scmp.le.s32.totalorder 1, %s17
      %p181 = scmp.lt.s32.totalorder %s17, 9
      %p182 = pnand %p180, %p181
      %p183 = pneg %p182
      // Predicated region
      $region9: #{tpu_custom_call.1} parent=5 // pred_check
        _
      $region10: #{tpu_custom_call.1} parent=5 // pred_check_branch
        %185 = sbr.rel (%p182) target = $region12
      $region11: #{tpu_custom_call.1} parent=5 // pred_region
        %s186 = ssub.s32 %s17, 1
        // Predicated region
        $region13: #{tpu_custom_call.1} parent=11 // pred_check
          %p187 = pneg %p92
        $region14: #{tpu_custom_call.1} parent=11 // pred_check_branch
          %189 = sbr.rel (%p187) target = $region16
        $region15: #{tpu_custom_call.1} parent=11 // pred_region
          %s191 = ssub.s32 3072, 3072
          %192 = vsyncadd [#allocation7], %s191
          %s193 = smul.addr %s29, 48
          %s194 = sadd.s32 %s28, %s193
          %s195 = smul.addr %s194, 64
          %s196 = scalar_lea.hbm %s1, %s195
          %s197 = sshll.u32 [#allocation6], 4
          %s198 = int_to_ptr.vmem [resolvable:$true] %s197
          %203 = dma.hbm_to_vmem [thread:$0]  %s196, 3072, %s198, [#allocation7], 64, 64, 4
        $region16: #{tpu_custom_call.1} parent=11 // pred_fallthru
          _
        // Predicated region
        $region17: #{tpu_custom_call.1} parent=11 // pred_check
          %p204 = pneg %p118
        $region18: #{tpu_custom_call.1} parent=11 // pred_check_branch
          %206 = sbr.rel (%p204) target = $region20
        $region19: #{tpu_custom_call.1} parent=11 // pred_region
          %p207 = scmp.lt.s32.totalorder %s28, 0
          %s208 = scalar_select %p207, %s28, 0
          %s209 = scalar_lea.vmem %s2, %s208
        $region20: #{tpu_custom_call.1} parent=11 // pred_fallthru
          _
        // Predicated region
        $region21: #{tpu_custom_call.1} parent=11 // pred_check
          %p210 = pneg %p144
        $region22: #{tpu_custom_call.1} parent=11 // pred_check_branch
          %212 = sbr.rel (%p210) target = $region24
        $region23: #{tpu_custom_call.1} parent=11 // pred_region
          %p213 = scmp.lt.s32.totalorder %s28, 0
          %s214 = scalar_select %p213, %s28, 0
          %s215 = scalar_lea.vmem %s3, %s214
        $region24: #{tpu_custom_call.1} parent=11 // pred_fallthru
          _
      $region12: #{tpu_custom_call.1} parent=5 // pred_fallthru
        _
      %p216 = scmp.lt.s32.totalorder %s17, 8
      // Predicated region
      $region25: #{tpu_custom_call.1} parent=5 // pred_check
        %p217 = pneg %p216
      $region26: #{tpu_custom_call.1} parent=5 // pred_check_branch
        %219 = sbr.rel (%p217) target = $region28
      $region27: #{tpu_custom_call.1} parent=5 // pred_region
        // Predicated region
        $region29: #{tpu_custom_call.1} parent=27 // pred_check
          %p220 = pneg %p58
        $region30: #{tpu_custom_call.1} parent=27 // pred_check_branch
          %222 = sbr.rel (%p220) target = $region32
        $region31: #{tpu_custom_call.1} parent=27 // pred_region
          %s223 = sand.u32 %s48, 1
          %s224 = scalar_lea.sflag [#allocation4], %s223
          %s225 = sand.u32 %s48, 1
          %s226 = smul.addr %s225, 192
          %s227 = scalar_lea.vmem [#allocation3], %s226
          %s228 = smul.u32 16, %s24
          %s230 = ssub.s32 3072, 3072
          %231 = vsyncadd %s224, %s230
          %s232 = smul.addr %s228, 3
          %s233 = smul.addr %s26, 384
          %s234 = sadd.s32 %s232, %s233
          %s235 = smul.addr %s234, 64
          %s236 = scalar_lea.hbm %s0, %s235
          %s237 = sshll.u32 %s227, 4
          %s238 = int_to_ptr.vmem [resolvable:$true] %s237
          %243 = dma.hbm_to_vmem [thread:$0]  %s236, 3072, %s238, %s224, 192, 192, 12
        $region32: #{tpu_custom_call.1} parent=27 // pred_fallthru
          _
      $region28: #{tpu_custom_call.1} parent=5 // pred_fallthru
        _
      %p244 = scmp.le.s32.totalorder 1, %s17
      %p245 = scmp.lt.s32.totalorder %s17, 9
      %p246 = pnand %p244, %p245
      %p247 = pneg %p246
      // Predicated region
      $region33: #{tpu_custom_call.1} parent=5 // pred_check
        _
      $region34: #{tpu_custom_call.1} parent=5 // pred_check_branch
        %249 = sbr.rel (%p246) target = $region36
      $region35: #{tpu_custom_call.1} parent=5 // pred_region
        %s250 = ssub.s32 %s17, 1
        %s251 = sand.u32 %s51, 1
        %s252 = scalar_lea.sflag [#allocation4], %s251
        %s253 = sand.u32 %s51, 1
        %s254 = smul.addr %s253, 192
        %s255 = scalar_lea.vmem [#allocation3], %s254
        // Predicated region
        $region37: #{tpu_custom_call.1} parent=35 // pred_check
          %p256 = pneg %p64
        $region38: #{tpu_custom_call.1} parent=35 // pred_check_branch
          %258 = sbr.rel (%p256) target = $region40
        $region39: #{tpu_custom_call.1} parent=35 // pred_region
          %259 = dma.done %s252, 3072
        $region40: #{tpu_custom_call.1} parent=35 // pred_fallthru
          _
        // Predicated region
        $region41: #{tpu_custom_call.1} parent=35 // pred_check
          %p260 = pneg %p92
        $region42: #{tpu_custom_call.1} parent=35 // pred_check_branch
          %262 = sbr.rel (%p260) target = $region44
        $region43: #{tpu_custom_call.1} parent=35 // pred_region
          %263 = dma.done [#allocation7], 3072
        $region44: #{tpu_custom_call.1} parent=35 // pred_fallthru
          _
        %s264 = sand.u32 %s51, 1
        %s265 = scalar_lea.sflag [#allocation4], %s264
        %s266 = sand.u32 %s51, 1
        %s267 = smul.addr %s266, 192
        %s268 = scalar_lea.vmem [#allocation3], %s267
        %p269 = pneg %p64
        %p270 = pneg %p61
        %p271 = pneg %p92
        %p272 = pneg %p89
        %p273 = scmp.lt.s32.totalorder %s28, 0
        %s274 = scalar_select %p273, %s28, 0
        %s275 = scalar_lea.vmem %s2, %s274
        %p276 = pneg %p118
        %p277 = pneg %p115
        %p278 = scmp.lt.s32.totalorder %s28, 0
        %s279 = scalar_select %p278, %s28, 0
        %s280 = scalar_lea.vmem %s3, %s279
        %p281 = pneg %p144
        %p282 = pneg %p141
        %p283 = pneg %p172
        %p284 = pneg %p169
        %s285 = sand.u32 %s159, 1
        %s286 = scalar_lea.sflag [#allocation5], %s285
        %s287 = sand.u32 %s159, 1
        %s288 = smul.addr %s287, 128
        %s289 = scalar_lea.vmem [#allocation8], %s288
        %s290 = smul.u32 16, %s27
        %p291 = scmp.lt.s32.totalorder %s28, 0
        %s292 = scalar_select %p291, %s28, 0
        %s293 = scalar_lea.vmem %s2, %s292
        %p294 = scmp.lt.s32.totalorder %s28, 0
        %s295 = scalar_select %p294, %s28, 0
        %s296 = scalar_lea.vmem %s3, %s295
        %s297 = smul.u32 16, %s27
        %p299 = scmp.eq.s32.totalorder %s29, 0
        // Predicated region
        $region45: #{tpu_custom_call.1} parent=35 // pred_check
          %p300 = pneg %p299
        $region46: #{tpu_custom_call.1} parent=35 // pred_check_branch
          %302 = sbr.rel (%p300) target = $region48
        $region47: #{tpu_custom_call.1} parent=35 // pred_region
          %303 = vst [vmem:[#allocation2] sm:$0xff] 0.0
          %304 = vst [vmem:[#allocation2 + $0x8] sm:$0xff] 0.0
          %305 = vst [vmem:[#allocation2 + $0x10] sm:$0xff] 0.0
          %306 = vst [vmem:[#allocation2 + $0x18] sm:$0xff] 0.0
          %307 = vst [vmem:[#allocation2 + $0x20] sm:$0xff] 0.0
          %308 = vst [vmem:[#allocation2 + $0x28] sm:$0xff] 0.0
          %309 = vst [vmem:[#allocation2 + $0x30] sm:$0xff] 0.0
          %310 = vst [vmem:[#allocation2 + $0x38] sm:$0xff] 0.0
          %311 = vst [vmem:[#allocation2 + $0x40] sm:$0xff] 0.0
          %312 = vst [vmem:[#allocation2 + $0x48] sm:$0xff] 0.0
          %313 = vst [vmem:[#allocation2 + $0x50] sm:$0xff] 0.0
          %314 = vst [vmem:[#allocation2 + $0x58] sm:$0xff] 0.0
          %315 = vst [vmem:[#allocation2 + $0x60] sm:$0xff] 0.0
          %316 = vst [vmem:[#allocation2 + $0x68] sm:$0xff] 0.0
          %317 = vst [vmem:[#allocation2 + $0x70] sm:$0xff] 0.0
          %318 = vst [vmem:[#allocation2 + $0x78] sm:$0xff] 0.0
        $region48: #{tpu_custom_call.1} parent=35 // pred_fallthru
          _
        %v319 = vld [vmem:[#allocation2] sm:$0xff]
        %v320 = vld [vmem:[#allocation2 + $0x8] sm:$0xff]
        %v321 = vld [vmem:[#allocation2 + $0x10] sm:$0xff]
        %v322 = vld [vmem:[#allocation2 + $0x18] sm:$0xff]
        %v323 = vld [vmem:[#allocation2 + $0x20] sm:$0xff]
        %v324 = vld [vmem:[#allocation2 + $0x28] sm:$0xff]
        %v325 = vld [vmem:[#allocation2 + $0x30] sm:$0xff]
        %v326 = vld [vmem:[#allocation2 + $0x38] sm:$0xff]
        %v327 = vld [vmem:[#allocation2 + $0x40] sm:$0xff]
        %v328 = vld [vmem:[#allocation2 + $0x48] sm:$0xff]
        %v329 = vld [vmem:[#allocation2 + $0x50] sm:$0xff]
        %v330 = vld [vmem:[#allocation2 + $0x58] sm:$0xff]
        %v331 = vld [vmem:[#allocation2 + $0x60] sm:$0xff]
        %v332 = vld [vmem:[#allocation2 + $0x68] sm:$0xff]
        %v333 = vld [vmem:[#allocation2 + $0x70] sm:$0xff]
        %v334 = vld [vmem:[#allocation2 + $0x78] sm:$0xff]
        %v335 = vld [vmem:[%s255] sm:$0xff]
        %v336 = vld [vmem:[%s255 + $0x8] sm:$0xf]
        %v337 = vld [vmem:[%s255 + $0xc] sm:$0xff]
        %v338 = vld [vmem:[%s255 + $0x14] sm:$0xf]
        %v339 = vld [vmem:[%s255 + $0x18] sm:$0xff]
        %v340 = vld [vmem:[%s255 + $0x20] sm:$0xf]
        %v341 = vld [vmem:[%s255 + $0x24] sm:$0xff]
        %v342 = vld [vmem:[%s255 + $0x2c] sm:$0xf]
        %v343 = vld [vmem:[%s255 + $0x30] sm:$0xff]
        %v344 = vld [vmem:[%s255 + $0x38] sm:$0xf]
        %v345 = vld [vmem:[%s255 + $0x3c] sm:$0xff]
        %v346 = vld [vmem:[%s255 + $0x44] sm:$0xf]
        %v347 = vld [vmem:[%s255 + $0x48] sm:$0xff]
        %v348 = vld [vmem:[%s255 + $0x50] sm:$0xf]
        %v349 = vld [vmem:[%s255 + $0x54] sm:$0xff]
        %v350 = vld [vmem:[%s255 + $0x5c] sm:$0xf]
        %v351 = vld [vmem:[%s255 + $0x60] sm:$0xff]
        %v352 = vld [vmem:[%s255 + $0x68] sm:$0xf]
        %v353 = vld [vmem:[%s255 + $0x6c] sm:$0xff]
        %v354 = vld [vmem:[%s255 + $0x74] sm:$0xf]
        %v355 = vld [vmem:[%s255 + $0x78] sm:$0xff]
        %v356 = vld [vmem:[%s255 + $0x80] sm:$0xf]
        %v357 = vld [vmem:[%s255 + $0x84] sm:$0xff]
        %v358 = vld [vmem:[%s255 + $0x8c] sm:$0xf]
        %v359 = vld [vmem:[%s255 + $0x90] sm:$0xff]
        %v360 = vld [vmem:[%s255 + $0x98] sm:$0xf]
        %v361 = vld [vmem:[%s255 + $0x9c] sm:$0xff]
        %v362 = vld [vmem:[%s255 + $0xa4] sm:$0xf]
        %v363 = vld [vmem:[%s255 + $0xa8] sm:$0xff]
        %v364 = vld [vmem:[%s255 + $0xb0] sm:$0xf]
        %v365 = vld [vmem:[%s255 + $0xb4] sm:$0xff]
        %v366 = vld [vmem:[%s255 + $0xbc] sm:$0xf]
        %v367 = vld [vmem:[#allocation6] sm:$0xf]
        %v368 = vld [vmem:[#allocation6 + $0x4] sm:$0xf]
        %v369 = vld [vmem:[#allocation6 + $0x8] sm:$0xf]
        %v370 = vld [vmem:[#allocation6 + $0xc] sm:$0xf]
        %v371 = vld [vmem:[#allocation6 + $0x10] sm:$0xf]
        %v372 = vld [vmem:[#allocation6 + $0x14] sm:$0xf]
        %v373 = vld [vmem:[#allocation6 + $0x18] sm:$0xf]
        %v374 = vld [vmem:[#allocation6 + $0x1c] sm:$0xf]
        %v375 = vld [vmem:[#allocation6 + $0x20] sm:$0xf]
        %v376 = vld [vmem:[#allocation6 + $0x24] sm:$0xf]
        %v377 = vld [vmem:[#allocation6 + $0x28] sm:$0xf]
        %v378 = vld [vmem:[#allocation6 + $0x2c] sm:$0xf]
        %v379 = vld [vmem:[#allocation6 + $0x30] sm:$0xf]
        %v380 = vld [vmem:[#allocation6 + $0x34] sm:$0xf]
        %v381 = vld [vmem:[#allocation6 + $0x38] sm:$0xf]
        %v382 = vld [vmem:[#allocation6 + $0x3c] sm:$0xf]
        %v383 = vld [vmem:[#allocation6 + $0x40] sm:$0xf]
        %v384 = vld [vmem:[#allocation6 + $0x44] sm:$0xf]
        %v385 = vld [vmem:[#allocation6 + $0x48] sm:$0xf]
        %v386 = vld [vmem:[#allocation6 + $0x4c] sm:$0xf]
        %v387 = vld [vmem:[#allocation6 + $0x50] sm:$0xf]
        %v388 = vld [vmem:[#allocation6 + $0x54] sm:$0xf]
        %v389 = vld [vmem:[#allocation6 + $0x58] sm:$0xf]
        %v390 = vld [vmem:[#allocation6 + $0x5c] sm:$0xf]
        %v391 = vld [vmem:[#allocation6 + $0x60] sm:$0xf]
        %v392 = vld [vmem:[#allocation6 + $0x64] sm:$0xf]
        %v393 = vld [vmem:[#allocation6 + $0x68] sm:$0xf]
        %v394 = vld [vmem:[#allocation6 + $0x6c] sm:$0xf]
        %v395 = vld [vmem:[#allocation6 + $0x70] sm:$0xf]
        %v396 = vld [vmem:[#allocation6 + $0x74] sm:$0xf]
        %v397 = vld [vmem:[#allocation6 + $0x78] sm:$0xf]
        %v398 = vld [vmem:[#allocation6 + $0x7c] sm:$0xf]
        %v399 = vld [vmem:[#allocation6 + $0x80] sm:$0xf]
        %v400 = vld [vmem:[#allocation6 + $0x84] sm:$0xf]
        %v401 = vld [vmem:[#allocation6 + $0x88] sm:$0xf]
        %v402 = vld [vmem:[#allocation6 + $0x8c] sm:$0xf]
        %v403 = vld [vmem:[#allocation6 + $0x90] sm:$0xf]
        %v404 = vld [vmem:[#allocation6 + $0x94] sm:$0xf]
        %v405 = vld [vmem:[#allocation6 + $0x98] sm:$0xf]
        %v406 = vld [vmem:[#allocation6 + $0x9c] sm:$0xf]
        %v407 = vld [vmem:[#allocation6 + $0xa0] sm:$0xf]
        %v408 = vld [vmem:[#allocation6 + $0xa4] sm:$0xf]
        %v409 = vld [vmem:[#allocation6 + $0xa8] sm:$0xf]
        %v410 = vld [vmem:[#allocation6 + $0xac] sm:$0xf]
        %v411 = vld [vmem:[#allocation6 + $0xb0] sm:$0xf]
        %v412 = vld [vmem:[#allocation6 + $0xb4] sm:$0xf]
        %v413 = vld [vmem:[#allocation6 + $0xb8] sm:$0xf]
        %v414 = vld [vmem:[#allocation6 + $0xbc] sm:$0xf]
        %v447 = vunpack.c.l.b16 %v335
        %v448 = vunpack.c.h.b16 %v335
        %v449 = vunpack.c.l.b16 %v336
        %v450 = vunpack.c.l.b16 %v337
        %v451 = vunpack.c.h.b16 %v337
        %v452 = vunpack.c.l.b16 %v338
        %v453 = vunpack.c.l.b16 %v339
        %v454 = vunpack.c.h.b16 %v339
        %v455 = vunpack.c.l.b16 %v340
        %v456 = vunpack.c.l.b16 %v341
        %v457 = vunpack.c.h.b16 %v341
        %v458 = vunpack.c.l.b16 %v342
        %v459 = vunpack.c.l.b16 %v343
        %v460 = vunpack.c.h.b16 %v343
        %v461 = vunpack.c.l.b16 %v344
        %v462 = vunpack.c.l.b16 %v345
        %v463 = vunpack.c.h.b16 %v345
        %v464 = vunpack.c.l.b16 %v346
        %v465 = vunpack.c.l.b16 %v347
        %v466 = vunpack.c.h.b16 %v347
        %v467 = vunpack.c.l.b16 %v348
        %v468 = vunpack.c.l.b16 %v349
        %v469 = vunpack.c.h.b16 %v349
        %v470 = vunpack.c.l.b16 %v350
        %v471 = vunpack.c.l.b16 %v351
        %v472 = vunpack.c.h.b16 %v351
        %v473 = vunpack.c.l.b16 %v352
        %v474 = vunpack.c.l.b16 %v353
        %v475 = vunpack.c.h.b16 %v353
        %v476 = vunpack.c.l.b16 %v354
        %v477 = vunpack.c.l.b16 %v355
        %v478 = vunpack.c.h.b16 %v355
        %v479 = vunpack.c.l.b16 %v356
        %v480 = vunpack.c.l.b16 %v357
        %v481 = vunpack.c.h.b16 %v357
        %v482 = vunpack.c.l.b16 %v358
        %v483 = vunpack.c.l.b16 %v359
        %v484 = vunpack.c.h.b16 %v359
        %v485 = vunpack.c.l.b16 %v360
        %v486 = vunpack.c.l.b16 %v361
        %v487 = vunpack.c.h.b16 %v361
        %v488 = vunpack.c.l.b16 %v362
        %v489 = vunpack.c.l.b16 %v363
        %v490 = vunpack.c.h.b16 %v363
        %v491 = vunpack.c.l.b16 %v364
        %v492 = vunpack.c.l.b16 %v365
        %v493 = vunpack.c.h.b16 %v365
        %v494 = vunpack.c.l.b16 %v366
        %v495 = vpack.c.b16 %v450, %v447
        %v496 = vpack.c.b16 %v451, %v448
        %v497 = vpack.c.b16 %v452, %v449
        %v498 = vpack.c.b16 %v456, %v453
        %v499 = vpack.c.b16 %v457, %v454
        %v500 = vpack.c.b16 %v458, %v455
        %v501 = vpack.c.b16 %v462, %v459
        %v502 = vpack.c.b16 %v463, %v460
        %v503 = vpack.c.b16 %v464, %v461
        %v504 = vpack.c.b16 %v468, %v465
        %v505 = vpack.c.b16 %v469, %v466
        %v506 = vpack.c.b16 %v470, %v467
        %v507 = vpack.c.b16 %v474, %v471
        %v508 = vpack.c.b16 %v475, %v472
        %v509 = vpack.c.b16 %v476, %v473
        %v510 = vpack.c.b16 %v480, %v477
        %v511 = vpack.c.b16 %v481, %v478
        %v512 = vpack.c.b16 %v482, %v479
        %v513 = vpack.c.b16 %v486, %v483
        %v514 = vpack.c.b16 %v487, %v484
        %v515 = vpack.c.b16 %v488, %v485
        %v516 = vpack.c.b16 %v492, %v489
        %v517 = vpack.c.b16 %v493, %v490
        %v518 = vpack.c.b16 %v494, %v491
        %v591 = vunpack.c.l.b16 %v367
        %v592 = vunpack.c.l.b16 %v368
        %v593 = vunpack.c.l.b16 %v369
        %v594 = vunpack.c.l.b16 %v370
        %v595 = vunpack.c.l.b16 %v371
        %v596 = vunpack.c.l.b16 %v372
        %v597 = vunpack.c.l.b16 %v373
        %v598 = vunpack.c.l.b16 %v374
        %v599 = vunpack.c.l.b16 %v375
        %v600 = vunpack.c.l.b16 %v376
        %v601 = vunpack.c.l.b16 %v377
        %v602 = vunpack.c.l.b16 %v378
        %v603 = vunpack.c.l.b16 %v379
        %v604 = vunpack.c.l.b16 %v380
        %v605 = vunpack.c.l.b16 %v381
        %v606 = vunpack.c.l.b16 %v382
        %v607 = vunpack.c.l.b16 %v383
        %v608 = vunpack.c.l.b16 %v384
        %v609 = vunpack.c.l.b16 %v385
        %v610 = vunpack.c.l.b16 %v386
        %v611 = vunpack.c.l.b16 %v387
        %v612 = vunpack.c.l.b16 %v388
        %v613 = vunpack.c.l.b16 %v389
        %v614 = vunpack.c.l.b16 %v390
        %v615 = vunpack.c.l.b16 %v391
        %v616 = vunpack.c.l.b16 %v392
        %v617 = vunpack.c.l.b16 %v393
        %v618 = vunpack.c.l.b16 %v394
        %v619 = vunpack.c.l.b16 %v395
        %v620 = vunpack.c.l.b16 %v396
        %v621 = vunpack.c.l.b16 %v397
        %v622 = vunpack.c.l.b16 %v398
        %v623 = vunpack.c.l.b16 %v399
        %v624 = vunpack.c.l.b16 %v400
        %v625 = vunpack.c.l.b16 %v401
        %v626 = vunpack.c.l.b16 %v402
        %v627 = vunpack.c.l.b16 %v403
        %v628 = vunpack.c.l.b16 %v404
        %v629 = vunpack.c.l.b16 %v405
        %v630 = vunpack.c.l.b16 %v406
        %v631 = vunpack.c.l.b16 %v407
        %v632 = vunpack.c.l.b16 %v408
        %v633 = vunpack.c.l.b16 %v409
        %v634 = vunpack.c.l.b16 %v410
        %v635 = vunpack.c.l.b16 %v411
        %v636 = vunpack.c.l.b16 %v412
        %v637 = vunpack.c.l.b16 %v413
        %v638 = vunpack.c.l.b16 %v414
        %v639 = vpack.c.b16 %v592, %v591
        %v640 = vpack.c.b16 %v594, %v593
        %v641 = vpack.c.b16 %v596, %v595
        %v642 = vpack.c.b16 %v598, %v597
        %v643 = vpack.c.b16 %v600, %v599
        %v644 = vpack.c.b16 %v602, %v601
        %v645 = vpack.c.b16 %v604, %v603
        %v646 = vpack.c.b16 %v606, %v605
        %v647 = vpack.c.b16 %v608, %v607
        %v648 = vpack.c.b16 %v610, %v609
        %v649 = vpack.c.b16 %v612, %v611
        %v650 = vpack.c.b16 %v614, %v613
        %v651 = vpack.c.b16 %v616, %v615
        %v652 = vpack.c.b16 %v618, %v617
        %v653 = vpack.c.b16 %v620, %v619
        %v654 = vpack.c.b16 %v622, %v621
        %v655 = vpack.c.b16 %v624, %v623
        %v656 = vpack.c.b16 %v626, %v625
        %v657 = vpack.c.b16 %v628, %v627
        %v658 = vpack.c.b16 %v630, %v629
        %v659 = vpack.c.b16 %v632, %v631
        %v660 = vpack.c.b16 %v634, %v633
        %v661 = vpack.c.b16 %v636, %v635
        %v662 = vpack.c.b16 %v638, %v637
        %687 = vmatprep.subr.bf16.mxu0 0
        %688 = vmatpush1.bf16.msra.mxu0 %v639
        %689 = vmatprep.subr.bf16.mxu0 0
        %690 = vmatpush1.bf16.msra.mxu0 %v640
        %691 = vmatprep.subr.bf16.mxu0 0
        %692 = vmatpush1.bf16.msra.mxu0 %v641
        %693 = vmatprep.subr.bf16.mxu0 0
        %694 = vmatpush1.bf16.msra.mxu0 %v642
        %695 = vmatprep.subr.bf16.mxu0 0
        %696 = vmatpush1.bf16.msra.mxu0 %v643
        %697 = vmatprep.subr.bf16.mxu0 0
        %698 = vmatpush1.bf16.msra.mxu0 %v644
        %699 = vmatprep.subr.bf16.mxu0 0
        %700 = vmatpush1.bf16.msra.mxu0 %v645
        %701 = vmatprep.subr.bf16.mxu0 0
        %702 = vmatpush1.bf16.msra.mxu0 %v646
        %703 = vmatprep.subr.bf16.mxu0 0
        %704 = vmatpush1.bf16.msra.mxu0 %v647
        %705 = vmatprep.subr.bf16.mxu0 0
        %706 = vmatpush1.bf16.msra.mxu0 %v648
        %707 = vmatprep.subr.bf16.mxu0 0
        %708 = vmatpush1.bf16.msra.mxu0 %v649
        %709 = vmatprep.subr.bf16.mxu0 0
        %710 = vmatpush1.bf16.msra.mxu0 %v650
        %711 = vmatprep.subr.bf16.mxu0 0
        %712 = vmatpush1.bf16.msra.mxu0 %v651
        %713 = vmatprep.subr.bf16.mxu0 0
        %714 = vmatpush1.bf16.msra.mxu0 %v652
        %715 = vmatprep.subr.bf16.mxu0 0
        %716 = vmatpush1.bf16.msra.mxu0 %v653
        %717 = vmatprep.subr.bf16.mxu0 0
        %718 = vmatpush1.bf16.msra.mxu0 %v654
        %719 = vmatprep.mubr.bf16.mxu0 %v496
        %720 = vmatmul.mubr.bf16.gmra.mrb[0].mxu0 %v495
        %v721 = vpop.f32.mrb[0].mxu0
        %v722 = vadd.f32 0.0, %v721
        %v723 = vpop.f32.mrb[0].mxu0
        %v724 = vpop.f32.mrb[0].mxu0
        %v725 = vadd.f32 0.0, %v724
        %v726 = vpop.f32.mrb[0].mxu0
        %727 = vmatprep.mubr.bf16.mxu0 %v499
        %728 = vmatmul.mubr.bf16.gmra.mrb[0].mxu0 %v498
        %v729 = vpop.f32.mrb[0].mxu0
        %v730 = vadd.f32 0.0, %v729
        %v731 = vpop.f32.mrb[0].mxu0
        %v732 = vpop.f32.mrb[0].mxu0
        %v733 = vadd.f32 0.0, %v732
        %v734 = vpop.f32.mrb[0].mxu0
        %735 = vmatprep.mubr.bf16.mxu0 %v502
        %736 = vmatmul.mubr.bf16.gmra.mrb[0].mxu0 %v501
        %v737 = vpop.f32.mrb[0].mxu0
        %v738 = vadd.f32 0.0, %v737
        %v739 = vpop.f32.mrb[0].mxu0
        %v740 = vpop.f32.mrb[0].mxu0
        %v741 = vadd.f32 0.0, %v740
        %v742 = vpop.f32.mrb[0].mxu0
        %743 = vmatprep.mubr.bf16.mxu0 %v505
        %744 = vmatmul.mubr.bf16.gmra.mrb[0].mxu0 %v504
        %v745 = vpop.f32.mrb[0].mxu0
        %v746 = vadd.f32 0.0, %v745
        %v747 = vpop.f32.mrb[0].mxu0
        %v748 = vpop.f32.mrb[0].mxu0
        %v749 = vadd.f32 0.0, %v748
        %v750 = vpop.f32.mrb[0].mxu0
        %751 = vmatprep.mubr.bf16.mxu0 %v508
        %752 = vmatmul.mubr.bf16.gmra.mrb[0].mxu0 %v507
        %v753 = vpop.f32.mrb[0].mxu0
        %v754 = vadd.f32 0.0, %v753
        %v755 = vpop.f32.mrb[0].mxu0
        %v756 = vpop.f32.mrb[0].mxu0
        %v757 = vadd.f32 0.0, %v756
        %v758 = vpop.f32.mrb[0].mxu0
        %759 = vmatprep.mubr.bf16.mxu0 %v511
        %760 = vmatmul.mubr.bf16.gmra.mrb[0].mxu0 %v510
        %v761 = vpop.f32.mrb[0].mxu0
        %v762 = vadd.f32 0.0, %v761
        %v763 = vpop.f32.mrb[0].mxu0
        %v764 = vpop.f32.mrb[0].mxu0
        %v765 = vadd.f32 0.0, %v764
        %v766 = vpop.f32.mrb[0].mxu0
        %767 = vmatprep.mubr.bf16.mxu0 %v514
        %768 = vmatmul.mubr.bf16.gmra.mrb[0].mxu0 %v513
        %v769 = vpop.f32.mrb[0].mxu0
        %v770 = vadd.f32 0.0, %v769
        %v771 = vpop.f32.mrb[0].mxu0
        %v772 = vpop.f32.mrb[0].mxu0
        %v773 = vadd.f32 0.0, %v772
        %v774 = vpop.f32.mrb[0].mxu0
        %775 = vmatprep.mubr.bf16.mxu0 %v517
        %776 = vmatmul.mubr.bf16.gmra.mrb[0].mxu0 %v516
        %v777 = vpop.f32.mrb[0].mxu0
        %v778 = vadd.f32 0.0, %v777
        %v779 = vpop.f32.mrb[0].mxu0
        %v780 = vpop.f32.mrb[0].mxu0
        %v781 = vadd.f32 0.0, %v780
        %v782 = vpop.f32.mrb[0].mxu0
        %783 = vdwg.mxu0
        %784 = vmatprep.subr.bf16.mxu0 0
        %785 = vmatpush1.bf16.msra.mxu0 %v655
        %786 = vmatprep.subr.bf16.mxu0 0
        %787 = vmatpush1.bf16.msra.mxu0 %v656
        %788 = vmatprep.subr.bf16.mxu0 0
        %789 = vmatpush1.bf16.msra.mxu0 %v657
        %790 = vmatprep.subr.bf16.mxu0 0
        %791 = vmatpush1.bf16.msra.mxu0 %v658
        %792 = vmatprep.subr.bf16.mxu0 0
        %793 = vmatpush1.bf16.msra.mxu0 %v659
        %794 = vmatprep.subr.bf16.mxu0 0
        %795 = vmatpush1.bf16.msra.mxu0 %v660
        %796 = vmatprep.subr.bf16.mxu0 0
        %797 = vmatpush1.bf16.msra.mxu0 %v661
        %798 = vmatprep.subr.bf16.mxu0 0
        %799 = vmatpush1.bf16.msra.mxu0 %v662
        %800 = vmatprep.subr.bf16.mxu0 0
        %801 = vmatpush1.bf16.msra.mxu0 0
        %802 = vmatprep.subr.bf16.mxu0 0
        %803 = vmatpush1.bf16.msra.mxu0 0
        %804 = vmatprep.subr.bf16.mxu0 0
        %805 = vmatpush1.bf16.msra.mxu0 0
        %806 = vmatprep.subr.bf16.mxu0 0
        %807 = vmatpush1.bf16.msra.mxu0 0
        %808 = vmatprep.subr.bf16.mxu0 0
        %809 = vmatpush1.bf16.msra.mxu0 0
        %810 = vmatprep.subr.bf16.mxu0 0
        %811 = vmatpush1.bf16.msra.mxu0 0
        %812 = vmatprep.subr.bf16.mxu0 0
        %813 = vmatpush1.bf16.msra.mxu0 0
        %814 = vmatprep.subr.bf16.mxu0 0
        %815 = vmatpush1.bf16.msra.mxu0 0
        %816 = vmatprep.mubr.bf16.mxu0 0
        %817 = vmatmul.mubr.bf16.gmra.mrb[0].mxu0 %v497
        %v818 = vpop.f32.mrb[0].mxu0
        %v819 = vadd.f32 %v722, %v818
        %v820 = vpop.f32.mrb[0].mxu0
        %v821 = vpop.f32.mrb[0].mxu0
        %v822 = vadd.f32 %v725, %v821
        %v823 = vpop.f32.mrb[0].mxu0
        %824 = vmatprep.mubr.bf16.mxu0 0
        %825 = vmatmul.mubr.bf16.gmra.mrb[0].mxu0 %v500
        %v826 = vpop.f32.mrb[0].mxu0
        %v827 = vadd.f32 %v730, %v826
        %v828 = vpop.f32.mrb[0].mxu0
        %v829 = vpop.f32.mrb[0].mxu0
        %v830 = vadd.f32 %v733, %v829
        %v831 = vpop.f32.mrb[0].mxu0
        %832 = vmatprep.mubr.bf16.mxu0 0
        %833 = vmatmul.mubr.bf16.gmra.mrb[0].mxu0 %v503
        %v834 = vpop.f32.mrb[0].mxu0
        %v835 = vadd.f32 %v738, %v834
        %v836 = vpop.f32.mrb[0].mxu0
        %v837 = vpop.f32.mrb[0].mxu0
        %v838 = vadd.f32 %v741, %v837
        %v839 = vpop.f32.mrb[0].mxu0
        %840 = vmatprep.mubr.bf16.mxu0 0
        %841 = vmatmul.mubr.bf16.gmra.mrb[0].mxu0 %v506
        %v842 = vpop.f32.mrb[0].mxu0
        %v843 = vadd.f32 %v746, %v842
        %v844 = vpop.f32.mrb[0].mxu0
        %v845 = vpop.f32.mrb[0].mxu0
        %v846 = vadd.f32 %v749, %v845
        %v847 = vpop.f32.mrb[0].mxu0
        %848 = vmatprep.mubr.bf16.mxu0 0
        %849 = vmatmul.mubr.bf16.gmra.mrb[0].mxu0 %v509
        %v850 = vpop.f32.mrb[0].mxu0
        %v851 = vadd.f32 %v754, %v850
        %v852 = vpop.f32.mrb[0].mxu0
        %v853 = vpop.f32.mrb[0].mxu0
        %v854 = vadd.f32 %v757, %v853
        %v855 = vpop.f32.mrb[0].mxu0
        %856 = vmatprep.mubr.bf16.mxu0 0
        %857 = vmatmul.mubr.bf16.gmra.mrb[0].mxu0 %v512
        %v858 = vpop.f32.mrb[0].mxu0
        %v859 = vadd.f32 %v762, %v858
        %v860 = vpop.f32.mrb[0].mxu0
        %v861 = vpop.f32.mrb[0].mxu0
        %v862 = vadd.f32 %v765, %v861
        %v863 = vpop.f32.mrb[0].mxu0
        %864 = vmatprep.mubr.bf16.mxu0 0
        %865 = vmatmul.mubr.bf16.gmra.mrb[0].mxu0 %v515
        %v866 = vpop.f32.mrb[0].mxu0
        %v867 = vadd.f32 %v770, %v866
        %v868 = vpop.f32.mrb[0].mxu0
        %v869 = vpop.f32.mrb[0].mxu0
        %v870 = vadd.f32 %v773, %v869
        %v871 = vpop.f32.mrb[0].mxu0
        %872 = vmatprep.mubr.bf16.mxu0 0
        %873 = vmatmul.mubr.bf16.gmra.mrb[0].mxu0 %v518
        %v874 = vpop.f32.mrb[0].mxu0
        %v875 = vadd.f32 %v778, %v874
        %v876 = vpop.f32.mrb[0].mxu0
        %v877 = vpop.f32.mrb[0].mxu0
        %v878 = vadd.f32 %v781, %v877
        %v879 = vpop.f32.mrb[0].mxu0
        %880 = vdwg.mxu0
        %v881 = vadd.f32 %v319, %v819
        %v882 = vadd.f32 %v320, %v822
        %v883 = vadd.f32 %v321, %v827
        %v884 = vadd.f32 %v322, %v830
        %v885 = vadd.f32 %v323, %v835
        %v886 = vadd.f32 %v324, %v838
        %v887 = vadd.f32 %v325, %v843
        %v888 = vadd.f32 %v326, %v846
        %v889 = vadd.f32 %v327, %v851
        %v890 = vadd.f32 %v328, %v854
        %v891 = vadd.f32 %v329, %v859
        %v892 = vadd.f32 %v330, %v862
        %v893 = vadd.f32 %v331, %v867
        %v894 = vadd.f32 %v332, %v870
        %v895 = vadd.f32 %v333, %v875
        %v896 = vadd.f32 %v334, %v878
        %897 = vst [vmem:[#allocation2] sm:$0xff] %v881
        %898 = vst [vmem:[#allocation2 + $0x8] sm:$0xff] %v882
        %899 = vst [vmem:[#allocation2 + $0x10] sm:$0xff] %v883
        %900 = vst [vmem:[#allocation2 + $0x18] sm:$0xff] %v884
        %901 = vst [vmem:[#allocation2 + $0x20] sm:$0xff] %v885
        %902 = vst [vmem:[#allocation2 + $0x28] sm:$0xff] %v886
        %903 = vst [vmem:[#allocation2 + $0x30] sm:$0xff] %v887
        %904 = vst [vmem:[#allocation2 + $0x38] sm:$0xff] %v888
        %905 = vst [vmem:[#allocation2 + $0x40] sm:$0xff] %v889
        %906 = vst [vmem:[#allocation2 + $0x48] sm:$0xff] %v890
        %907 = vst [vmem:[#allocation2 + $0x50] sm:$0xff] %v891
        %908 = vst [vmem:[#allocation2 + $0x58] sm:$0xff] %v892
        %909 = vst [vmem:[#allocation2 + $0x60] sm:$0xff] %v893
        %910 = vst [vmem:[#allocation2 + $0x68] sm:$0xff] %v894
        %911 = vst [vmem:[#allocation2 + $0x70] sm:$0xff] %v895
        %912 = vst [vmem:[#allocation2 + $0x78] sm:$0xff] %v896
        // Predicated region
        $region49: #{tpu_custom_call.1} parent=35 // pred_check
          %p913 = pneg %p299
        $region50: #{tpu_custom_call.1} parent=35 // pred_check_branch
          %915 = sbr.rel (%p913) target = $region52
        $region51: #{tpu_custom_call.1} parent=35 // pred_region
          %v916 = vld [vmem:[#allocation2] sm:$0xff]
          %v917 = vld [vmem:[#allocation2 + $0x8] sm:$0xff]
          %v918 = vld [vmem:[#allocation2 + $0x10] sm:$0xff]
          %v919 = vld [vmem:[#allocation2 + $0x18] sm:$0xff]
          %v920 = vld [vmem:[#allocation2 + $0x20] sm:$0xff]
          %v921 = vld [vmem:[#allocation2 + $0x28] sm:$0xff]
          %v922 = vld [vmem:[#allocation2 + $0x30] sm:$0xff]
          %v923 = vld [vmem:[#allocation2 + $0x38] sm:$0xff]
          %v924 = vld [vmem:[#allocation2 + $0x40] sm:$0xff]
          %v925 = vld [vmem:[#allocation2 + $0x48] sm:$0xff]
          %v926 = vld [vmem:[#allocation2 + $0x50] sm:$0xff]
          %v927 = vld [vmem:[#allocation2 + $0x58] sm:$0xff]
          %v928 = vld [vmem:[#allocation2 + $0x60] sm:$0xff]
          %v929 = vld [vmem:[#allocation2 + $0x68] sm:$0xff]
          %v930 = vld [vmem:[#allocation2 + $0x70] sm:$0xff]
          %v931 = vld [vmem:[#allocation2 + $0x78] sm:$0xff]
          %v932 = vld [vmem:[%s293] sm:$0x1]
          %v934 = vlaneseq
          %v935 = vshrl.u32 %v934, 7
          %v936 = vsub.s32 0, %v935
          %v937 = vrot.slane %v932, %v936
          %v939 = vmul.f32 %v916, %v937
          %v940 = vmul.f32 %v917, %v937
          %v941 = vmul.f32 %v918, %v937
          %v942 = vmul.f32 %v919, %v937
          %v943 = vmul.f32 %v920, %v937
          %v944 = vmul.f32 %v921, %v937
          %v945 = vmul.f32 %v922, %v937
          %v946 = vmul.f32 %v923, %v937
          %v947 = vmul.f32 %v924, %v937
          %v948 = vmul.f32 %v925, %v937
          %v949 = vmul.f32 %v926, %v937
          %v950 = vmul.f32 %v927, %v937
          %v951 = vmul.f32 %v928, %v937
          %v952 = vmul.f32 %v929, %v937
          %v953 = vmul.f32 %v930, %v937
          %v954 = vmul.f32 %v931, %v937
          %v955 = vld [vmem:[%s296] sm:$0x1]
          %v957 = vlaneseq
          %v958 = vshrl.u32 %v957, 7
          %v959 = vsub.s32 0, %v958
          %v960 = vrot.slane %v955, %v959
          %v962 = vadd.f32 %v939, %v960
          %v963 = vadd.f32 %v940, %v960
          %v964 = vadd.f32 %v941, %v960
          %v965 = vadd.f32 %v942, %v960
          %v966 = vadd.f32 %v943, %v960
          %v967 = vadd.f32 %v944, %v960
          %v968 = vadd.f32 %v945, %v960
          %v969 = vadd.f32 %v946, %v960
          %v970 = vadd.f32 %v947, %v960
          %v971 = vadd.f32 %v948, %v960
          %v972 = vadd.f32 %v949, %v960
          %v973 = vadd.f32 %v950, %v960
          %v974 = vadd.f32 %v951, %v960
          %v975 = vadd.f32 %v952, %v960
          %v976 = vadd.f32 %v953, %v960
          %v977 = vadd.f32 %v954, %v960
          %v978 = vmax.f32 %v962, 0.0
          %v979 = vmax.f32 %v963, 0.0
          %v980 = vmax.f32 %v964, 0.0
          %v981 = vmax.f32 %v965, 0.0
          %v982 = vmax.f32 %v966, 0.0
          %v983 = vmax.f32 %v967, 0.0
          %v984 = vmax.f32 %v968, 0.0
          %v985 = vmax.f32 %v969, 0.0
          %v986 = vmax.f32 %v970, 0.0
          %v987 = vmax.f32 %v971, 0.0
          %v988 = vmax.f32 %v972, 0.0
          %v989 = vmax.f32 %v973, 0.0
          %v990 = vmax.f32 %v974, 0.0
          %v991 = vmax.f32 %v975, 0.0
          %v992 = vmax.f32 %v976, 0.0
          %v993 = vmax.f32 %v977, 0.0
          %994 = vst [vmem:[%s289] sm:$0xff] %v978
          %995 = vst [vmem:[%s289 + $0x8] sm:$0xff] %v979
          %996 = vst [vmem:[%s289 + $0x10] sm:$0xff] %v980
          %997 = vst [vmem:[%s289 + $0x18] sm:$0xff] %v981
          %998 = vst [vmem:[%s289 + $0x20] sm:$0xff] %v982
          %999 = vst [vmem:[%s289 + $0x28] sm:$0xff] %v983
          %1000 = vst [vmem:[%s289 + $0x30] sm:$0xff] %v984
          %1001 = vst [vmem:[%s289 + $0x38] sm:$0xff] %v985
          %1002 = vst [vmem:[%s289 + $0x40] sm:$0xff] %v986
          %1003 = vst [vmem:[%s289 + $0x48] sm:$0xff] %v987
          %1004 = vst [vmem:[%s289 + $0x50] sm:$0xff] %v988
          %1005 = vst [vmem:[%s289 + $0x58] sm:$0xff] %v989
          %1006 = vst [vmem:[%s289 + $0x60] sm:$0xff] %v990
          %1007 = vst [vmem:[%s289 + $0x68] sm:$0xff] %v991
          %1008 = vst [vmem:[%s289 + $0x70] sm:$0xff] %v992
          %1009 = vst [vmem:[%s289 + $0x78] sm:$0xff] %v993
        $region52: #{tpu_custom_call.1} parent=35 // pred_fallthru
          _
        %s1010 = sand.u32 %s159, 1
        %s1011 = scalar_lea.sflag [#allocation5], %s1010
        %s1012 = sand.u32 %s159, 1
        %s1013 = smul.addr %s1012, 128
        %s1014 = scalar_lea.vmem [#allocation8], %s1013
        // Predicated region
        $region53: #{tpu_custom_call.1} parent=35 // pred_check
          %p1015 = pneg %p169
        $region54: #{tpu_custom_call.1} parent=35 // pred_check_branch
          %1017 = sbr.rel (%p1015) target = $region56
        $region55: #{tpu_custom_call.1} parent=35 // pred_region
          %s1018 = smul.u32 16, %s27
          %s1020 = ssub.s32 2048, 2048
          %1021 = vsyncadd %s1011, %s1020
          %s1022 = sadd.s32 %s28, %s1018
          %s1023 = smul.addr %s1022, 128
          %s1024 = scalar_lea.hbm %s4, %s1023
          %s1025 = sshll.u32 %s1014, 4
          %s1026 = int_to_ptr.vmem [resolvable:$true] %s1025
          %1031 = dma.vmem_to_hbm [thread:$0]  %s1026, 2048, %s1024, %s1011, 128, 128, 8
        $region56: #{tpu_custom_call.1} parent=35 // pred_fallthru
          _
      $region36: #{tpu_custom_call.1} parent=5 // pred_fallthru
        _
      %p1032 = scmp.le.s32.totalorder 2, %s17
      // Predicated region
      $region57: #{tpu_custom_call.1} parent=5 // pred_check
        %p1033 = pneg %p1032
      $region58: #{tpu_custom_call.1} parent=5 // pred_check_branch
        %1035 = sbr.rel (%p1033) target = $region60
      $region59: #{tpu_custom_call.1} parent=5 // pred_region
        %s1036 = ssub.s32 %s17, 2
        // Predicated region
        $region61: #{tpu_custom_call.1} parent=59 // pred_check
          %p1037 = pneg %p175
        $region62: #{tpu_custom_call.1} parent=59 // pred_check_branch
          %1039 = sbr.rel (%p1037) target = $region64
        $region63: #{tpu_custom_call.1} parent=59 // pred_region
          %s1040 = sand.u32 %s160, 1
          %s1041 = scalar_lea.sflag [#allocation5], %s1040
          %s1042 = sand.u32 %s160, 1
          %s1043 = smul.addr %s1042, 128
          %s1044 = scalar_lea.vmem [#allocation8], %s1043
          %1045 = dma.done %s1041, 2048
        $region64: #{tpu_custom_call.1} parent=59 // pred_fallthru
          _
      $region60: #{tpu_custom_call.1} parent=5 // pred_fallthru
        _
    $region6: #{tpu_custom_call.1} parent=1 // loop_footer
      %s21 = sadd.s32 1, %s17
    $region7: #{tpu_custom_call.1} parent=1 // loop_footer_branch
      %16 = sbr.rel target = $region3
    $region8: #{tpu_custom_call.1} parent=1 // loop_exit
      _
    %1046 = vsyncpa [#allocation4], 1
    %s1047 = scalar_lea.sflag [#allocation4], 1
    %1048 = vsyncpa %s1047, 1
    %1049 = vsyncpa [#allocation7], 1
    %1050 = vsyncpa [#allocation5], 1
    %s1051 = scalar_lea.sflag [#allocation5], 1
    %1052 = vsyncpa %s1051, 1

</llo_original>
